<compile_context>
chip_gen: v5e
topology: v5e:2x2
jax: 0.10.0
libtpu: 0.0.40
codegen_flags: <defaults>
</compile_context>

<pallas_src>
import functools

import jax
import jax.numpy as jnp
from jax import lax
from jax.experimental import pallas as pl
from jax.experimental.pallas import tpu as pltpu


def _round_up(x: int, m: int) -> int:
    return (x + m - 1) // m * m


def _cdiv(a: int, b: int) -> int:
    return (a + b - 1) // b


@functools.lru_cache(maxsize=1)
def _vmem_limit_bytes() -> int:
    """Generation-aware VMEM limit with headroom for Mosaic internal scratch."""
    try:
        cap = int(pltpu.get_tpu_info().vmem_capacity_bytes)
    except Exception:
        cap = 64 * 1024 * 1024  # conservative: assume v7x-sized VMEM
    # ~25% headroom: 64 MiB (v7x) -> 48 MiB, 128 MiB (v5e/v6e) -> 96 MiB.
    return min((cap * 3) // 4, 100 * 1024 * 1024)


def _embed_gather_kernel(ids_ref, iota_ref, w_ref, o_ref):
    # ids_ref:  (tm, 1)      int32  token ids for this block
    # iota_ref: (tm, v_pad)  int32  precomputed vocab-index grid (constant block)
    # w_ref:    (v_pad, d_pad)      full padded table, resident in VMEM
    # o_ref:    (tm, d_pad)         gathered embeddings (lane-dense: d_pad>=128)
    onehot = (ids_ref[...] == iota_ref[...]).astype(w_ref.dtype)  # (tm, v_pad)
    # One MXU matmul does the whole gather for this token block.  For f32
    # tables this is a multi-pass bf16 MXU op, but it is exact here (one-hot
    # rows are exactly 0/1) and the MXU is not the binding unit.
    o_ref[...] = jnp.dot(
        onehot, w_ref[...], preferred_element_type=jnp.float32
    ).astype(o_ref.dtype)


def prepare_embed_table(w_e):
    """One-time layout plumbing (hoist out of the per-call forward path).

    (d_model, d_vocab) -> row-gather layout (v_pad, d_pad), zero-padded so that
    both the MXU contraction dim (v_pad) and the output lane dim (d_pad) are
    multiples of 128.
    """
    d_model, d_vocab = w_e.shape
    v_pad = _round_up(d_vocab, 128)
    d_pad = _round_up(d_model, 128)
    w_t = jnp.zeros((v_pad, d_pad), w_e.dtype).at[:d_vocab, :d_model].set(w_e.T)
    return w_t


@functools.partial(jax.jit, static_argnames=("d_model", "tm"))
def embed_forward_prepared(x, w_t, *, d_model, tm=512):
    """x: (batch, pos) int token ids; w_t: prepared (v_pad, d_pad) table."""
    batch, pos = x.shape
    v_pad, d_pad = w_t.shape
    itemsize = jnp.dtype(w_t.dtype).itemsize
    M = batch * pos

    # NOTE: PyTorch indexing raises on out-of-range ids; here out-of-range or
    # negative ids silently produce an all-zero embedding row.
    ids = x.reshape(M).astype(jnp.int32)

    # ---- token-block size ------------------------------------------------
    tm_eff = max(8, _round_up(min(tm, M), 8))
    # Prefer >= 2 grid steps so both v7x TensorCores get work ("parallel" axis).
    if M > 8 and _cdiv(M, tm_eff) < 2:
        tm_eff = max(8, _round_up(_cdiv(M, 2), 8))

    vmem_limit = _vmem_limit_bytes()

    def _vmem_budget(t):
        return (
            2 * v_pad * d_pad * itemsize       # resident table (conservative x2)
            + 2 * t * v_pad * 4                # iota input (double-buffered)
            + 2 * t * v_pad * max(4, itemsize) # one-hot / compare temporaries
            + 2 * t * d_pad * itemsize         # output blocks (double-buffered)
            + 2 * t * 128 * 4                  # id blocks ((t,1) padded to 128 lanes)
        )

    # Shrink the token block until the budget fits the per-generation limit.
    while _vmem_budget(tm_eff) > vmem_limit and tm_eff > 8:
        tm_eff = max(8, _round_up(tm_eff // 2, 8))
    if _vmem_budget(tm_eff) > vmem_limit:
        # TODO(synk): large-vocab path: scalar-prefetch ids into SMEM + manual
        # DMA row gather from HBM (memory_space=pl.ANY) with multiple in-flight
        # row copies per block, instead of the VMEM-resident one-hot matmul.
        raise NotImplementedError(
            "Embedding table too large for the VMEM-resident gather strategy."
        )

    m_pad = _round_up(M, tm_eff)
    ids2d = jnp.pad(ids, (0, m_pad - M)).reshape(m_pad, 1)
    iota = lax.broadcasted_iota(jnp.int32, (tm_eff, v_pad), 1)
    grid = (m_pad // tm_eff,)

    out2d = pl.pallas_call(
        _embed_gather_kernel,
        out_shape=jax.ShapeDtypeStruct((m_pad, d_pad), w_t.dtype),
        grid_spec=pltpu.PrefetchScalarGridSpec(
            num_scalar_prefetch=0,
            grid=grid,
            in_specs=[
                # Token-id block: (tm, 1); last dim equals the full array dim.
                pl.BlockSpec((tm_eff, 1), lambda i: (i, 0)),
                # Precomputed iota, constant index_map -> fetched once per core.
                pl.BlockSpec((tm_eff, v_pad), lambda i: (0, 0)),
                # Whole padded table, constant index_map -> held resident in VMEM.
                pl.BlockSpec((v_pad, d_pad), lambda i: (0, 0)),
            ],
            out_specs=pl.BlockSpec((tm_eff, d_pad), lambda i: (i, 0)),
        ),
        compiler_params=pltpu.CompilerParams(
            dimension_semantics=("parallel",),
            vmem_limit_bytes=vmem_limit,
        ),
        cost_estimate=pl.CostEstimate(
            flops=2 * m_pad * v_pad * d_pad,
            transcendentals=0,
            bytes_accessed=(
                m_pad * 4                      # ids
                + v_pad * d_pad * itemsize     # table (once)
                + tm_eff * v_pad * 4           # iota (once)
                + m_pad * d_pad * itemsize     # output
            ),
        ),
    )(ids2d, iota, w_t)

    # Strip token padding and the lane padding of d_model.
    return out2d[:M, :d_model].reshape(batch, pos, d_model)


def embed_forward(x, w_e, *, tm=512):
    """Convenience wrapper matching the PyTorch layout W_E: (d_model, d_vocab).

    For real use, call `prepare_embed_table` once and reuse its result with
    `embed_forward_prepared` (the transpose/pad is pure layout plumbing).
    """
    d_model, _ = w_e.shape
    w_t = prepare_embed_table(w_e)
    return embed_forward_prepared(x, w_t, d_model=d_model, tm=tm)


if __name__ == "__main__":
    # Small shapes consistent with the grokking example's Embed module.
    batch, seq, d_model, d_vocab = 2, 8, 32, 114

    key = jax.random.PRNGKey(0)
    kw, kx = jax.random.split(key)

    # Mirrors torch.randn(d_model, d_vocab) / sqrt(d_model).
    w_e = jax.random.normal(kw, (d_model, d_vocab), dtype=jnp.float32) / jnp.sqrt(
        jnp.float32(d_model)
    )
    x = jax.random.randint(kx, (batch, seq), 0, d_vocab, dtype=jnp.int32)

    # One-time table preparation (hoisted out of the forward path), then forward.
    w_t = prepare_embed_table(w_e)
    out = embed_forward_prepared(x, w_t, d_model=d_model)
    out = jax.block_until_ready(out)

    # Reference: einsum('dbp -> bpd', W_E[:, x]).
    ref = jnp.transpose(w_e[:, x], (1, 2, 0))
    assert out.shape == (batch, seq, d_model)
    assert jnp.allclose(out, ref, atol=1e-5, rtol=1e-5)

    print("KERNEL_OK")
</pallas_src>

<mosaic_0001>
module attributes {stable_mosaic.version = 11 : i64} {
  func.func @_embed_gather_kernel(%arg0: i32, %arg1: memref<8x1xi32, #tpu.memory_space<vmem>>, %arg2: memref<8x128xi32, #tpu.memory_space<vmem>>, %arg3: memref<128x128xf32, #tpu.memory_space<vmem>>, %arg4: memref<8x128xf32, #tpu.memory_space<vmem>>) attributes {dimension_semantics = [#tpu.dimension_semantics<parallel>], iteration_bounds = array<i64: 2>, scalar_prefetch = 0 : i64, scratch_operands = 0 : i64, tpu.core_type = #tpu.core_type<tc>, window_params = [{transform_indices = @transform_0, window_bounds = array<i64: 8, 1>}, {pipeline_mode = #tpu.pipeline_mode<synchronous>, transform_indices = @transform_1, window_bounds = array<i64: 8, 128>}, {pipeline_mode = #tpu.pipeline_mode<synchronous>, transform_indices = @transform_2, window_bounds = array<i64: 128, 128>}, {transform_indices = @transform_3, window_bounds = array<i64: 8, 128>}]} {
    %c0 = arith.constant 0 : index
    %c0_0 = arith.constant 0 : index
    %0 = vector.load %arg1[%c0, %c0_0] : memref<8x1xi32, #tpu.memory_space<vmem>>, vector<8x1xi32>
    %c0_1 = arith.constant 0 : index
    %c0_2 = arith.constant 0 : index
    %1 = vector.load %arg2[%c0_1, %c0_2] : memref<8x128xi32, #tpu.memory_space<vmem>>, vector<8x128xi32>
    %2 = vector.broadcast %0 : vector<8x1xi32> to vector<8x128xi32>
    %3 = arith.cmpi eq, %2, %1 : vector<8x128xi32>
    %4 = arith.extui %3 : vector<8x128xi1> to vector<8x128xi32>
    %5 = arith.sitofp %4 : vector<8x128xi32> to vector<8x128xf32>
    %c0_3 = arith.constant 0 : index
    %c0_4 = arith.constant 0 : index
    %6 = vector.load %arg3[%c0_3, %c0_4] : memref<128x128xf32, #tpu.memory_space<vmem>>, vector<128x128xf32>
    %cst = arith.constant dense<0.000000e+00> : vector<8x128xf32>
    %7 = tpu.matmul %5, %6, %cst {dimension_numbers = #tpu.dot_dimension_numbers<[1], [0], [0], [1], [0, 0, 1, 1], [], []>} : vector<8x128xf32>, vector<128x128xf32>, vector<8x128xf32> -> vector<8x128xf32>
    %c0_5 = arith.constant 0 : index
    %c0_6 = arith.constant 0 : index
    %8 = vector.load %arg4[%c0_5, %c0_6] : memref<8x128xf32, #tpu.memory_space<vmem>>, vector<8x128xf32>
    tpu.vector_store %arg4[%c0_5, %c0_6], %7 {strides = array<i32>} : memref<8x128xf32, #tpu.memory_space<vmem>>, vector<8x128xf32>,
    return
  }
  func.func @transform_0(%arg0: i32) -> (i32, i32) {
    %c0_i32 = arith.constant 0 : i32
    %c0_i32_0 = arith.constant 0 : i32
    return %arg0, %c0_i32 : i32, i32
  }
  func.func @transform_1(%arg0: i32) -> (i32, i32) {
    %c0_i32 = arith.constant 0 : i32
    %c0_i32_0 = arith.constant 0 : i32
    %c0_i32_1 = arith.constant 0 : i32
    return %c0_i32, %c0_i32_0 : i32, i32
  }
  func.func @transform_2(%arg0: i32) -> (i32, i32) {
    %c0_i32 = arith.constant 0 : i32
    %c0_i32_0 = arith.constant 0 : i32
    %c0_i32_1 = arith.constant 0 : i32
    return %c0_i32, %c0_i32_0 : i32, i32
  }
  func.func @transform_3(%arg0: i32) -> (i32, i32) {
    %c0_i32 = arith.constant 0 : i32
    %c0_i32_0 = arith.constant 0 : i32
    return %arg0, %c0_i32 : i32, i32
  }
}

</mosaic_0001>

<llo_original>
// kernel: embed_forward_prepared.1
$region0: #{embed_forward_prepared.1}
  #allocation0 [shape = 'u32[]', space=smem, size = 0x4, offset = 0x4, fixed_abs, tag = 'smem constant byte address 0x4 - core index']
  #allocation1 [shape = 'u32[72,128]{1,0:T(1,128)}', space=vmem, size = 0x9000, scoped, tag = 'internal scratch']
  %s0 = inlined_call_operand.vmem [shape: s32[16,1], index: 0, kind: input, shape index: {}]
  %s1 = inlined_call_operand.vmem [shape: s32[8,128], index: 1, kind: input, shape index: {}]
  %s2 = inlined_call_operand.hbm [shape: f32[128,128], index: 2, kind: input, shape index: {}]
  %s3 = inlined_call_operand.vmem [shape: f32[16,128], index: 3, kind: output, shape index: {}]
  %s4 = sld [smem:[#allocation0]]
  $region49: #{embed_forward_prepared.1} parent=0
    _
  %s6 = ssub.s32 1, %s4
  %s7 = scalar_select 0, %s6, %s4
  $region1: #{embed_forward_prepared.1} parent=0
    #allocation2 [shape = 'u8[65536]{0}', space=vmem, size = 0x10000, scoped, tag = 'input window, operand 2, single buffered']
    #allocation3 [shape = 's32[2]{0}', space=sflag, size = 0x8, scoped, tag = 'scoped memory for embed_forward_prepared.1']
    %8 = vsyncpa [#allocation3], 0
    loop: start=0, step=1, limit=4
    $region2: #{embed_forward_prepared.1} parent=1 // loop_pre_header
      _
    $region3: #{embed_forward_prepared.1} parent=1 // loop_header
      %s10 = sphi 0, %s14
      %p11 = scmp.ge.s32.totalorder %s10, 4
      %s20 = sphi 0, %s22
      %s23 = sphi 0, %s20
      %s24 = sphi 0, %s23
      %s40 = sphi 0, %s24
      %s44 = sphi 0, %s44
      %s46 = sphi 0, %s44
      %s47 = sphi 0, %s46
      %s61 = sphi 0, %s47
      %s65 = sphi 0, %s65
      %s67 = sphi 0, %s65
      %s68 = sphi 0, %s67
      %s82 = sphi 0, %s68
      %s88 = sphi 0, %s90
      %s91 = sphi 0, %s88
      %s92 = sphi 0, %s91
      %s108 = sphi 0, %s92
    $region4: #{embed_forward_prepared.1} parent=1 // loop_header_branch
      %13 = sbr.rel (%p11) target = $region8
    $region5: #{embed_forward_prepared.1} parent=1 // loop_body
      %s15 = ssub.s32 %s10, 1
      %s16 = ssub.s32 %s10, 2
      %s17 = sadd.s32 %s10, 1
      %s18 = ssub.s32 %s10, %s17
      %p19 = scmp.eq.s32.totalorder %s18, 0
      %s21 = sadd.s32 %s20, 1
      %s22 = scalar_select %p19, %s20, %s21
      %p25 = pneg %p19
      %p26 = scmp.eq.s32.totalorder %s10, 1
      %p27 = por %p25, %p26
      %p28 = scmp.ne.s32.totalorder %s20, %s23
      %p29 = scmp.eq.s32.totalorder %s10, 0
      %p30 = por %p28, %p29
      %p31 = scmp.ne.s32.totalorder %s20, %s23
      %p32 = scmp.eq.s32.totalorder %s15, 1
      %p33 = por %p31, %p32
      %p34 = scmp.ne.s32.totalorder %s23, %s24
      %p35 = scmp.eq.s32.totalorder %s15, 0
      %p36 = por %p34, %p35
      %p37 = scmp.ne.s32.totalorder %s23, %s24
      %p38 = scmp.eq.s32.totalorder %s16, 1
      %p39 = por %p37, %p38
      %p41 = scmp.ne.s32.totalorder %s24, %s40
      %p42 = scmp.eq.s32.totalorder %s16, 0
      %p43 = por %p41, %p42
      %s45 = sadd.s32 %s44, 1
      %p48 = scmp.eq.s32.totalorder %s10, 1
      %p49 = scmp.ne.s32.totalorder %s44, %s46
      %p50 = scmp.eq.s32.totalorder %s10, 0
      %p51 = por %p49, %p50
      %p52 = scmp.ne.s32.totalorder %s44, %s46
      %p53 = scmp.eq.s32.totalorder %s15, 1
      %p54 = por %p52, %p53
      %p55 = scmp.ne.s32.totalorder %s46, %s47
      %p56 = scmp.eq.s32.totalorder %s15, 0
      %p57 = por %p55, %p56
      %p58 = scmp.ne.s32.totalorder %s46, %s47
      %p59 = scmp.eq.s32.totalorder %s16, 1
      %p60 = por %p58, %p59
      %p62 = scmp.ne.s32.totalorder %s47, %s61
      %p63 = scmp.eq.s32.totalorder %s16, 0
      %p64 = por %p62, %p63
      %s66 = sadd.s32 %s65, 1
      %p69 = scmp.eq.s32.totalorder %s10, 1
      %p70 = scmp.ne.s32.totalorder %s65, %s67
      %p71 = scmp.eq.s32.totalorder %s10, 0
      %p72 = por %p70, %p71
      %p73 = scmp.ne.s32.totalorder %s65, %s67
      %p74 = scmp.eq.s32.totalorder %s15, 1
      %p75 = por %p73, %p74
      %p76 = scmp.ne.s32.totalorder %s67, %s68
      %p77 = scmp.eq.s32.totalorder %s15, 0
      %p78 = por %p76, %p77
      %p79 = scmp.ne.s32.totalorder %s67, %s68
      %p80 = scmp.eq.s32.totalorder %s16, 1
      %p81 = por %p79, %p80
      %p83 = scmp.ne.s32.totalorder %s68, %s82
      %p84 = scmp.eq.s32.totalorder %s16, 0
      %p85 = por %p83, %p84
      %s86 = ssub.s32 %s10, %s17
      %p87 = scmp.eq.s32.totalorder %s86, 0
      %s89 = sadd.s32 %s88, 1
      %s90 = scalar_select %p87, %s88, %s89
      %p93 = pneg %p87
      %p94 = scmp.eq.s32.totalorder %s10, 1
      %p95 = por %p93, %p94
      %p96 = scmp.ne.s32.totalorder %s88, %s91
      %p97 = scmp.eq.s32.totalorder %s10, 0
      %p98 = por %p96, %p97
      %p99 = scmp.ne.s32.totalorder %s88, %s91
      %p100 = scmp.eq.s32.totalorder %s15, 1
      %p101 = por %p99, %p100
      %p102 = scmp.ne.s32.totalorder %s91, %s92
      %p103 = scmp.eq.s32.totalorder %s15, 0
      %p104 = por %p102, %p103
      %p105 = scmp.ne.s32.totalorder %s91, %s92
      %p106 = scmp.eq.s32.totalorder %s16, 1
      %p107 = por %p105, %p106
      %p109 = scmp.ne.s32.totalorder %s92, %s108
      %p110 = scmp.eq.s32.totalorder %s16, 0
      %p111 = por %p109, %p110
      %p112 = scmp.le.s32.totalorder 1, %s10
      %p113 = scmp.lt.s32.totalorder %s10, 3
      %p114 = pnand %p112, %p113
      %p115 = pneg %p114
      // Predicated region
      $region9: #{embed_forward_prepared.1} parent=5 // pred_check
        _
      $region10: #{embed_forward_prepared.1} parent=5 // pred_check_branch
        %117 = sbr.rel (%p114) target = $region12
      $region11: #{embed_forward_prepared.1} parent=5 // pred_region
        %s118 = ssub.s32 %s10, 1
        // Predicated region
        $region13: #{embed_forward_prepared.1} parent=11 // pred_check
          %p119 = pneg %p57
        $region14: #{embed_forward_prepared.1} parent=11 // pred_check_branch
          %121 = sbr.rel (%p119) target = $region16
        $region15: #{embed_forward_prepared.1} parent=11 // pred_region
          _
        $region16: #{embed_forward_prepared.1} parent=11 // pred_fallthru
          _
        // Predicated region
        $region17: #{embed_forward_prepared.1} parent=11 // pred_check
          %p122 = pneg %p78
        $region18: #{embed_forward_prepared.1} parent=11 // pred_check_branch
          %124 = sbr.rel (%p122) target = $region20
        $region19: #{embed_forward_prepared.1} parent=11 // pred_region
          %126 = vsyncadd [#allocation3], 0
          %s127 = sshll.u32 %s2, 4
          %s128 = int_to_ptr.hbm [resolvable:$true] %s127
          %s129 = sshll.u32 [#allocation2], 4
          %s130 = int_to_ptr.vmem [resolvable:$true] %s129
          %135 = dma.hbm_to_vmem [thread:$0]  %s128, 2048, %s130, [#allocation3], 128, 128, 8
        $region20: #{embed_forward_prepared.1} parent=11 // pred_fallthru
          _
      $region12: #{embed_forward_prepared.1} parent=5 // pred_fallthru
        _
      %p136 = scmp.lt.s32.totalorder %s10, 2
      // Predicated region
      $region21: #{embed_forward_prepared.1} parent=5 // pred_check
        %p137 = pneg %p136
      $region22: #{embed_forward_prepared.1} parent=5 // pred_check_branch
        %139 = sbr.rel (%p137) target = $region24
      $region23: #{embed_forward_prepared.1} parent=5 // pred_region
        // Predicated region
        $region25: #{embed_forward_prepared.1} parent=23 // pred_check
          %p140 = pneg %p30
        $region26: #{embed_forward_prepared.1} parent=23 // pred_check_branch
          %142 = sbr.rel (%p140) target = $region28
        $region27: #{embed_forward_prepared.1} parent=23 // pred_region
          %p143 = scmp.lt.s32.totalorder %s10, 1
          %s144 = scalar_select %p143, %s10, 1
          %s145 = smul.addr %s144, 8
          %s146 = scalar_lea.vmem %s0, %s145
        $region28: #{embed_forward_prepared.1} parent=23 // pred_fallthru
          _
      $region24: #{embed_forward_prepared.1} parent=5 // pred_fallthru
        _
      %p147 = scmp.le.s32.totalorder 1, %s10
      %p148 = scmp.lt.s32.totalorder %s10, 3
      %p149 = pnand %p147, %p148
      %p150 = pneg %p149
      // Predicated region
      $region29: #{embed_forward_prepared.1} parent=5 // pred_check
        _
      $region30: #{embed_forward_prepared.1} parent=5 // pred_check_branch
        %152 = sbr.rel (%p149) target = $region32
      $region31: #{embed_forward_prepared.1} parent=5 // pred_region
        %s153 = ssub.s32 %s10, 1
        // Predicated region
        $region33: #{embed_forward_prepared.1} parent=31 // pred_check
          %p154 = pneg %p78
        $region34: #{embed_forward_prepared.1} parent=31 // pred_check_branch
          %156 = sbr.rel (%p154) target = $region36
        $region35: #{embed_forward_prepared.1} parent=31 // pred_region
          %158 = dma.done [#allocation3], 2048
        $region36: #{embed_forward_prepared.1} parent=31 // pred_fallthru
          _
        %p159 = scmp.lt.s32.totalorder %s15, 1
        %s160 = scalar_select %p159, %s15, 1
        %s161 = smul.addr %s160, 8
        %s162 = scalar_lea.vmem %s0, %s161
        %p163 = pneg %p36
        %p164 = pneg %p33
        %p165 = pneg %p57
        %p166 = pneg %p54
        %p167 = pneg %p78
        %p168 = pneg %p75
        %p169 = pneg %p104
        %p170 = pneg %p101
        %p171 = scmp.lt.s32.totalorder %s15, 1
        %s172 = scalar_select %p171, %s15, 1
        %s173 = smul.addr %s172, 8
        %s174 = scalar_lea.vmem %s3, %s173
        %p175 = scmp.lt.s32.totalorder %s15, 1
        %s176 = scalar_select %p175, %s15, 1
        %s177 = smul.addr %s176, 8
        %s178 = scalar_lea.vmem %s0, %s177
        %p179 = scmp.lt.s32.totalorder %s15, 1
        %s180 = scalar_select %p179, %s15, 1
        %s181 = smul.addr %s180, 8
        %s182 = scalar_lea.vmem %s3, %s181
        %v183 = vld [vmem:[%s178] sm:$0xff]
        %v184 = vld [vmem:[%s1] sm:$0xff]
        %185 = vset.pattern.permute.xlu0 0
        %186 = vperm.xlu0 %185, %v183
        %v187 = vpop.permute.xlu0 %186
        %vm188 = vcmp.eq.s32.totalorder %v187, %v184
        %v189 = vsel %vm188, 1, 0
        %v190 = vcvt.s32.f32 %v189
        %v191 = vld [vmem:[#allocation2] sm:$0xff]
        %v192 = vld [vmem:[#allocation2 + $0x8] sm:$0xff]
        %v193 = vld [vmem:[#allocation2 + $0x10] sm:$0xff]
        %v194 = vld [vmem:[#allocation2 + $0x18] sm:$0xff]
        %v195 = vld [vmem:[#allocation2 + $0x20] sm:$0xff]
        %v196 = vld [vmem:[#allocation2 + $0x28] sm:$0xff]
        %v197 = vld [vmem:[#allocation2 + $0x30] sm:$0xff]
        %v198 = vld [vmem:[#allocation2 + $0x38] sm:$0xff]
        %v199 = vld [vmem:[#allocation2 + $0x40] sm:$0xff]
        %v200 = vld [vmem:[#allocation2 + $0x48] sm:$0xff]
        %v201 = vld [vmem:[#allocation2 + $0x50] sm:$0xff]
        %v202 = vld [vmem:[#allocation2 + $0x58] sm:$0xff]
        %v203 = vld [vmem:[#allocation2 + $0x60] sm:$0xff]
        %v204 = vld [vmem:[#allocation2 + $0x68] sm:$0xff]
        %v205 = vld [vmem:[#allocation2 + $0x70] sm:$0xff]
        %v206 = vld [vmem:[#allocation2 + $0x78] sm:$0xff]
        %207 = vmatpush.msra.mxu0 %v206
        %208 = vmatpush.msra.mxu0 %v205
        %209 = vmatpush.msra.mxu0 %v204
        %210 = vmatpush.msra.mxu0 %v203
        %211 = vmatpush.msra.mxu0 %v202
        %212 = vmatpush.msra.mxu0 %v201
        %213 = vmatpush.msra.mxu0 %v200
        %214 = vmatpush.msra.mxu0 %v199
        %215 = vmatpush.msra.mxu0 %v198
        %216 = vmatpush.msra.mxu0 %v197
        %217 = vmatpush.msra.mxu0 %v196
        %218 = vmatpush.msra.mxu0 %v195
        %219 = vmatpush.msra.mxu0 %v194
        %220 = vmatpush.msra.mxu0 %v193
        %221 = vmatpush.msra.mxu0 %v192
        %222 = vmatpush.msra.mxu0 %v191
        %223 = vmatmul.f32.gmra.mxu0 %v190
        %v224 = vpop.f32.mrf.mxu0
        %v225 = vadd.f32 0.0, %v224
        %226 = vdwg.mxu0
        %227 = vst [vmem:[%s182] sm:$0xff] %v225
        %p228 = scmp.lt.s32.totalorder %s15, 1
        %s229 = scalar_select %p228, %s15, 1
        %s230 = smul.addr %s229, 8
        %s231 = scalar_lea.vmem %s3, %s230
        // Predicated region
        $region37: #{embed_forward_prepared.1} parent=31 // pred_check
          %p232 = pneg %p101
        $region38: #{embed_forward_prepared.1} parent=31 // pred_check_branch
          %234 = sbr.rel (%p232) target = $region40
        $region39: #{embed_forward_prepared.1} parent=31 // pred_region
          _
        $region40: #{embed_forward_prepared.1} parent=31 // pred_fallthru
          _
      $region32: #{embed_forward_prepared.1} parent=5 // pred_fallthru
        _
      %p235 = scmp.le.s32.totalorder 2, %s10
      // Predicated region
      $region41: #{embed_forward_prepared.1} parent=5 // pred_check
        %p236 = pneg %p235
      $region42: #{embed_forward_prepared.1} parent=5 // pred_check_branch
        %238 = sbr.rel (%p236) target = $region44
      $region43: #{embed_forward_prepared.1} parent=5 // pred_region
        %s239 = ssub.s32 %s10, 2
        // Predicated region
        $region45: #{embed_forward_prepared.1} parent=43 // pred_check
          %p240 = pneg %p107
        $region46: #{embed_forward_prepared.1} parent=43 // pred_check_branch
          %242 = sbr.rel (%p240) target = $region48
        $region47: #{embed_forward_prepared.1} parent=43 // pred_region
          %p243 = scmp.lt.s32.totalorder %s16, 1
          %s244 = scalar_select %p243, %s16, 1
          %s245 = smul.addr %s244, 8
          %s246 = scalar_lea.vmem %s3, %s245
        $region48: #{embed_forward_prepared.1} parent=43 // pred_fallthru
          _
      $region44: #{embed_forward_prepared.1} parent=5 // pred_fallthru
        _
    $region6: #{embed_forward_prepared.1} parent=1 // loop_footer
      %s14 = sadd.s32 1, %s10
    $region7: #{embed_forward_prepared.1} parent=1 // loop_footer_branch
      %9 = sbr.rel target = $region3
    $region8: #{embed_forward_prepared.1} parent=1 // loop_exit
      _
    %247 = vsyncpa [#allocation3], 1
    %s248 = scalar_lea.sflag [#allocation3], 1
    %249 = vsyncpa %s248, 1

</llo_original>
